<compile_context>
chip_gen: v7x
topology: tpu7x:2x2x1
jax: 0.10.0
libtpu: 0.0.40
codegen_flags: <defaults>
</compile_context>

<pallas_src>
import functools

import jax
import jax.numpy as jnp
from jax.experimental import pallas as pl
from jax.experimental.pallas import tpu as pltpu


def _round_up(n, m):
    return ((n + m - 1) // m) * m


# ---------------------------------------------------------------------------
# Fused kernel: nerf expansion + all Linear(+ReLU) layers in one body
# ---------------------------------------------------------------------------

def _fused_mlp_kernel(*refs, n_layers, nerf):
    x_ref = refs[0]
    o_ref = refs[-1]
    prefs = refs[1:-1]          # flattened parameter refs (all resident in VMEM)

    f32 = jnp.float32
    x = x_ref[...]

    if nerf:
        # first-layer weight pre-split into thirds -> three MXU dots, no lane concat
        w_a, w_b, w_c, b0 = prefs[0], prefs[1], prefs[2], prefs[3]
        h = (jnp.dot(x, w_a[...], preferred_element_type=f32)
             + jnp.dot(jnp.sin(x), w_b[...], preferred_element_type=f32)
             + jnp.dot(jnp.cos(x), w_c[...], preferred_element_type=f32))
        h = h + b0[...]
        rest = prefs[4:]
    else:
        w0, b0 = prefs[0], prefs[1]
        h = jnp.dot(x, w0[...], preferred_element_type=f32) + b0[...]
        rest = prefs[2:]

    if n_layers > 1:
        h = jnp.maximum(h, 0.0)     # Dropout(0.1) is identity in eval mode

    for i in range(1, n_layers):    # unrolled at trace time
        w_ref = rest[2 * (i - 1)]
        b_ref = rest[2 * (i - 1) + 1]
        h = jnp.dot(h, w_ref[...], preferred_element_type=f32) + b_ref[...]
        if i + 1 < n_layers:
            h = jnp.maximum(h, 0.0)

    o_ref[...] = h.astype(o_ref.dtype)


# ---------------------------------------------------------------------------
# Wrapper: parameter prep + batch-tiled grid
# ---------------------------------------------------------------------------

def fully_connected_net(x, params, nerf, *, batch_tile=4096):
    # batch_tile is the tuned knob; 2048-4096 amortizes per-step overhead while
    # per-buffer VMEM stays tiny (x tile = TB*D*4 B, intermediates ~TB*H*4 B).
    B, D = x.shape
    n_layers = len(params)
    out_features = params[-1][0].shape[1]

    # ---- one-time parameter prep (plain JAX; constant-folded under jit) ----
    flat = []
    for i, (w, b) in enumerate(params):
        if nerf and i == 0:
            # split 3D-wide weight for the [x, sin(x), cos(x)] pieces
            flat += [w[:D], w[D:2 * D], w[2 * D:], b]
        else:
            flat += [w, b]

    # ---- batch tiling (no HBM pad of x; ragged tail = Pallas partial block) ----
    TB = min(batch_tile, _round_up(B, 8))
    # v7x dual-TC: keep the "parallel" batch grid >= 2 steps when batch is big
    # enough to split; irrelevant (and harmless) on single-TC v5e/v6e.
    if B >= 512 and pl.cdiv(B, TB) < 2:
        TB = _round_up(pl.cdiv(B, 2), 8)
    grid = pl.cdiv(B, TB)

    in_specs = [pl.BlockSpec((TB, D), lambda i: (i, 0))]          # streamed activations
    for p in flat:
        # whole-array block, constant index -> parameters pinned in VMEM across steps
        in_specs.append(pl.BlockSpec(p.shape, lambda i: (0, 0)))
    # true-width output block: no 128-lane padding, ~30x less HBM writeback
    out_specs = pl.BlockSpec((TB, out_features), lambda i: (i, 0))

    kernel = functools.partial(_fused_mlp_kernel, n_layers=n_layers, nerf=nerf)

    return pl.pallas_call(
        kernel,
        out_shape=jax.ShapeDtypeStruct((B, out_features), x.dtype),
        grid_spec=pltpu.PrefetchScalarGridSpec(
            num_scalar_prefetch=0,
            grid=(grid,),
            in_specs=in_specs,
            out_specs=out_specs,
        ),
        compiler_params=pltpu.CompilerParams(
            dimension_semantics=("parallel",)),
    )(x, *flat)


# ---------------------------------------------------------------------------
# Parameter init (mirrors the module's __init__ shapes / init scheme)
# ---------------------------------------------------------------------------

def init_params(key, layer_sizes, nerf):
    params = []
    for i, (in_size, out_size) in enumerate(zip(layer_sizes[:-1], layer_sizes[1:])):
        if nerf and i == 0:
            in_size = in_size * 3
        key, wk, bk = jax.random.split(key, 3)
        # nn.init.xavier_normal_: std = sqrt(2 / (fan_in + fan_out))
        std = (2.0 / (in_size + out_size)) ** 0.5
        w = std * jax.random.normal(wk, (in_size, out_size), jnp.float32)
        # nn.Linear default bias init: U(-1/sqrt(fan_in), 1/sqrt(fan_in))
        bound = 1.0 / (in_size ** 0.5)
        b = jax.random.uniform(bk, (1, out_size), jnp.float32, -bound, bound)
        params.append((w, b))
    return params


# ---------------------------------------------------------------------------
# Pure-JAX reference
# ---------------------------------------------------------------------------

def fully_connected_net_ref(x, params, nerf):
    h = jnp.concatenate([x, jnp.sin(x), jnp.cos(x)], axis=-1) if nerf else x
    n_layers = len(params)
    for i, (w, b) in enumerate(params):
        h = h @ w + b
        if (i + 1) < n_layers:
            h = jnp.maximum(h, 0.0)
    return h


# ---------------------------------------------------------------------------
# Main
# ---------------------------------------------------------------------------

if __name__ == "__main__":
    layer_sizes = [4, 32, 32, 1]   # input dim 4, two hidden layers of 32, scalar output
    batch_size = 8
    nerf = True

    key = jax.random.PRNGKey(0)
    key, xk = jax.random.split(key)
    x = jax.random.normal(xk, (batch_size, layer_sizes[0]), jnp.float32)

    params = init_params(key, layer_sizes, nerf)

    y = fully_connected_net(x, params, nerf)
    y = jax.block_until_ready(y)

    y_ref = fully_connected_net_ref(x, params, nerf)
    assert y.shape == (batch_size, layer_sizes[-1])
    assert jnp.allclose(y, y_ref, atol=1e-5, rtol=1e-5), "mismatch vs pure-JAX reference"

    print("KERNEL_OK")
</pallas_src>

<mosaic_0001>
module attributes {stable_mosaic.version = 11 : i64} {
  func.func @_fused_mlp_kernel(%arg0: i32, %arg1: memref<8x4xf32, #tpu.memory_space<vmem>>, %arg2: memref<4x32xf32, #tpu.memory_space<vmem>>, %arg3: memref<4x32xf32, #tpu.memory_space<vmem>>, %arg4: memref<4x32xf32, #tpu.memory_space<vmem>>, %arg5: memref<1x32xf32, #tpu.memory_space<vmem>>, %arg6: memref<32x32xf32, #tpu.memory_space<vmem>>, %arg7: memref<1x32xf32, #tpu.memory_space<vmem>>, %arg8: memref<32x1xf32, #tpu.memory_space<vmem>>, %arg9: memref<1x1xf32, #tpu.memory_space<vmem>>, %arg10: memref<8x1xf32, #tpu.memory_space<vmem>>) attributes {dimension_semantics = [#tpu.dimension_semantics<parallel>], iteration_bounds = array<i64: 1>, scalar_prefetch = 0 : i64, scratch_operands = 0 : i64, tpu.core_type = #tpu.core_type<tc>, window_params = [{transform_indices = @transform_0, window_bounds = array<i64: 8, 4>}, {pipeline_mode = #tpu.pipeline_mode<synchronous>, transform_indices = @transform_1, window_bounds = array<i64: 4, 32>}, {pipeline_mode = #tpu.pipeline_mode<synchronous>, transform_indices = @transform_2, window_bounds = array<i64: 4, 32>}, {pipeline_mode = #tpu.pipeline_mode<synchronous>, transform_indices = @transform_3, window_bounds = array<i64: 4, 32>}, {pipeline_mode = #tpu.pipeline_mode<synchronous>, transform_indices = @transform_4, window_bounds = array<i64: 1, 32>}, {pipeline_mode = #tpu.pipeline_mode<synchronous>, transform_indices = @transform_5, window_bounds = array<i64: 32, 32>}, {pipeline_mode = #tpu.pipeline_mode<synchronous>, transform_indices = @transform_6, window_bounds = array<i64: 1, 32>}, {pipeline_mode = #tpu.pipeline_mode<synchronous>, transform_indices = @transform_7, window_bounds = array<i64: 32, 1>}, {pipeline_mode = #tpu.pipeline_mode<synchronous>, transform_indices = @transform_8, window_bounds = array<i64: 1, 1>}, {transform_indices = @transform_9, window_bounds = array<i64: 8, 1>}]} {
    %c0 = arith.constant 0 : index
    %c0_0 = arith.constant 0 : index
    %0 = vector.load %arg1[%c0, %c0_0] : memref<8x4xf32, #tpu.memory_space<vmem>>, vector<8x4xf32>
    %c0_1 = arith.constant 0 : index
    %c0_2 = arith.constant 0 : index
    %1 = vector.load %arg2[%c0_1, %c0_2] : memref<4x32xf32, #tpu.memory_space<vmem>>, vector<4x32xf32>
    %cst = arith.constant dense<0.000000e+00> : vector<8x32xf32>
    %2 = tpu.matmul %0, %1, %cst {dimension_numbers = #tpu.dot_dimension_numbers<[1], [0], [0], [1], [0, 0, 1, 1], [], []>} : vector<8x4xf32>, vector<4x32xf32>, vector<8x32xf32> -> vector<8x32xf32>
    %3 = math.sin %0 : vector<8x4xf32>
    %c0_3 = arith.constant 0 : index
    %c0_4 = arith.constant 0 : index
    %4 = vector.load %arg3[%c0_3, %c0_4] : memref<4x32xf32, #tpu.memory_space<vmem>>, vector<4x32xf32>
    %cst_5 = arith.constant dense<0.000000e+00> : vector<8x32xf32>
    %5 = tpu.matmul %3, %4, %cst_5 {dimension_numbers = #tpu.dot_dimension_numbers<[1], [0], [0], [1], [0, 0, 1, 1], [], []>} : vector<8x4xf32>, vector<4x32xf32>, vector<8x32xf32> -> vector<8x32xf32>
    %6 = arith.addf %2, %5 : vector<8x32xf32>
    %7 = math.cos %0 : vector<8x4xf32>
    %c0_6 = arith.constant 0 : index
    %c0_7 = arith.constant 0 : index
    %8 = vector.load %arg4[%c0_6, %c0_7] : memref<4x32xf32, #tpu.memory_space<vmem>>, vector<4x32xf32>
    %cst_8 = arith.constant dense<0.000000e+00> : vector<8x32xf32>
    %9 = tpu.matmul %7, %8, %cst_8 {dimension_numbers = #tpu.dot_dimension_numbers<[1], [0], [0], [1], [0, 0, 1, 1], [], []>} : vector<8x4xf32>, vector<4x32xf32>, vector<8x32xf32> -> vector<8x32xf32>
    %10 = arith.addf %6, %9 : vector<8x32xf32>
    %c0_9 = arith.constant 0 : index
    %c0_10 = arith.constant 0 : index
    %11 = vector.load %arg5[%c0_9, %c0_10] : memref<1x32xf32, #tpu.memory_space<vmem>>, vector<1x32xf32>
    %12 = vector.broadcast %11 : vector<1x32xf32> to vector<8x32xf32>
    %13 = arith.addf %10, %12 : vector<8x32xf32>
    %cst_11 = arith.constant 0.000000e+00 : f32
    %14 = vector.broadcast %cst_11 : f32 to vector<8x32xf32>
    %15 = arith.maximumf %13, %14 : vector<8x32xf32>
    %c0_12 = arith.constant 0 : index
    %c0_13 = arith.constant 0 : index
    %16 = vector.load %arg6[%c0_12, %c0_13] : memref<32x32xf32, #tpu.memory_space<vmem>>, vector<32x32xf32>
    %cst_14 = arith.constant dense<0.000000e+00> : vector<8x32xf32>
    %17 = tpu.matmul %15, %16, %cst_14 {dimension_numbers = #tpu.dot_dimension_numbers<[1], [0], [0], [1], [0, 0, 1, 1], [], []>} : vector<8x32xf32>, vector<32x32xf32>, vector<8x32xf32> -> vector<8x32xf32>
    %c0_15 = arith.constant 0 : index
    %c0_16 = arith.constant 0 : index
    %18 = vector.load %arg7[%c0_15, %c0_16] : memref<1x32xf32, #tpu.memory_space<vmem>>, vector<1x32xf32>
    %19 = vector.broadcast %18 : vector<1x32xf32> to vector<8x32xf32>
    %20 = arith.addf %17, %19 : vector<8x32xf32>
    %cst_17 = arith.constant 0.000000e+00 : f32
    %21 = vector.broadcast %cst_17 : f32 to vector<8x32xf32>
    %22 = arith.maximumf %20, %21 : vector<8x32xf32>
    %c0_18 = arith.constant 0 : index
    %c0_19 = arith.constant 0 : index
    %23 = vector.load %arg8[%c0_18, %c0_19] : memref<32x1xf32, #tpu.memory_space<vmem>>, vector<32x1xf32>
    %cst_20 = arith.constant dense<0.000000e+00> : vector<8x1xf32>
    %24 = tpu.matmul %22, %23, %cst_20 {dimension_numbers = #tpu.dot_dimension_numbers<[1], [0], [0], [1], [0, 0, 1, 1], [], []>} : vector<8x32xf32>, vector<32x1xf32>, vector<8x1xf32> -> vector<8x1xf32>
    %c0_21 = arith.constant 0 : index
    %c0_22 = arith.constant 0 : index
    %25 = vector.load %arg9[%c0_21, %c0_22] : memref<1x1xf32, #tpu.memory_space<vmem>>, vector<1x1xf32>
    %26 = vector.broadcast %25 : vector<1x1xf32> to vector<8x1xf32>
    %27 = arith.addf %24, %26 : vector<8x1xf32>
    %c0_23 = arith.constant 0 : index
    %c0_24 = arith.constant 0 : index
    %28 = vector.load %arg10[%c0_23, %c0_24] : memref<8x1xf32, #tpu.memory_space<vmem>>, vector<8x1xf32>
    tpu.vector_store %arg10[%c0_23, %c0_24], %27 {strides = array<i32>} : memref<8x1xf32, #tpu.memory_space<vmem>>, vector<8x1xf32>,
    return
  }
  func.func @transform_0(%arg0: i32) -> (i32, i32) {
    %c0_i32 = arith.constant 0 : i32
    %c0_i32_0 = arith.constant 0 : i32
    return %arg0, %c0_i32 : i32, i32
  }
  func.func @transform_1(%arg0: i32) -> (i32, i32) {
    %c0_i32 = arith.constant 0 : i32
    %c0_i32_0 = arith.constant 0 : i32
    %c0_i32_1 = arith.constant 0 : i32
    return %c0_i32, %c0_i32_0 : i32, i32
  }
  func.func @transform_2(%arg0: i32) -> (i32, i32) {
    %c0_i32 = arith.constant 0 : i32
    %c0_i32_0 = arith.constant 0 : i32
    %c0_i32_1 = arith.constant 0 : i32
    return %c0_i32, %c0_i32_0 : i32, i32
  }
  func.func @transform_3(%arg0: i32) -> (i32, i32) {
    %c0_i32 = arith.constant 0 : i32
    %c0_i32_0 = arith.constant 0 : i32
    %c0_i32_1 = arith.constant 0 : i32
    return %c0_i32, %c0_i32_0 : i32, i32
  }
  func.func @transform_4(%arg0: i32) -> (i32, i32) {
    %c0_i32 = arith.constant 0 : i32
    %c0_i32_0 = arith.constant 0 : i32
    %c0_i32_1 = arith.constant 0 : i32
    return %c0_i32, %c0_i32_0 : i32, i32
  }
  func.func @transform_5(%arg0: i32) -> (i32, i32) {
    %c0_i32 = arith.constant 0 : i32
    %c0_i32_0 = arith.constant 0 : i32
    %c0_i32_1 = arith.constant 0 : i32
    return %c0_i32, %c0_i32_0 : i32, i32
  }
  func.func @transform_6(%arg0: i32) -> (i32, i32) {
    %c0_i32 = arith.constant 0 : i32
    %c0_i32_0 = arith.constant 0 : i32
    %c0_i32_1 = arith.constant 0 : i32
    return %c0_i32, %c0_i32_0 : i32, i32
  }
  func.func @transform_7(%arg0: i32) -> (i32, i32) {
    %c0_i32 = arith.constant 0 : i32
    %c0_i32_0 = arith.constant 0 : i32
    %c0_i32_1 = arith.constant 0 : i32
    return %c0_i32, %c0_i32_0 : i32, i32
  }
  func.func @transform_8(%arg0: i32) -> (i32, i32) {
    %c0_i32 = arith.constant 0 : i32
    %c0_i32_0 = arith.constant 0 : i32
    %c0_i32_1 = arith.constant 0 : i32
    return %c0_i32, %c0_i32_0 : i32, i32
  }
  func.func @transform_9(%arg0: i32) -> (i32, i32) {
    %c0_i32 = arith.constant 0 : i32
    %c0_i32_0 = arith.constant 0 : i32
    return %arg0, %c0_i32 : i32, i32
  }
}

</mosaic_0001>

<llo_original>
// kernel: tpu_custom_call.1
$region0: #{tpu_custom_call.1}
  #allocation0 [shape = 'u32[]', space=smem, size = 0x4, offset = 0x4, fixed_abs, tag = 'smem constant byte address 0x4 - core index']
  #allocation1 [shape = 'u32[144,128]{1,0:T(1,128)}', space=vmem, size = 0x12000, scoped, tag = 'internal scratch']
  #allocation2 [shape = 'f32[1,1]{1,0:T(1,128)S(1)}', space=vmem, size = 0x200, scoped, tag = 'scoped memory for tpu_custom_call.1']
  %s0 = inlined_call_operand.vmem [shape: f32[8,4], index: 0, kind: input, shape index: {}]
  %s1 = inlined_call_operand.vmem [shape: f32[4,32], index: 1, kind: input, shape index: {}]
  %s2 = inlined_call_operand.vmem [shape: f32[4,32], index: 2, kind: input, shape index: {}]
  %s3 = inlined_call_operand.vmem [shape: f32[4,32], index: 3, kind: input, shape index: {}]
  %s4 = inlined_call_operand.vmem [shape: f32[1,32], index: 4, kind: input, shape index: {}]
  %s5 = inlined_call_operand.vmem [shape: f32[32,32], index: 5, kind: input, shape index: {}]
  %s6 = inlined_call_operand.vmem [shape: f32[1,32], index: 6, kind: input, shape index: {}]
  %s7 = inlined_call_operand.vmem [shape: f32[32,1], index: 7, kind: input, shape index: {}]
  %s8 = inlined_call_operand.<no memory space> [shape: f32[1,1], index: 8, kind: input, shape index: {}]
  %s9 = inlined_call_operand.vmem [shape: f32[8,1], index: 9, kind: output, shape index: {}]
  %s10 = sld [smem:[#allocation0]]
  $region46: #{tpu_custom_call.1} parent=0
    _
  %s12 = ssub.s32 1, %s10
  %s13 = scalar_select 0, %s12, %s10
  %v14 = vstv %s8
  %15 = vst [vmem:[#allocation2] sm:$0x1] %v14
  // Predicated region
  $region2: #{tpu_custom_call.1} parent=0 // pred_check
    _
  $region3: #{tpu_custom_call.1} parent=0 // pred_check_branch
    %17 = sbr.rel (0) target = $region5
  $region4: #{tpu_custom_call.1} parent=0 // pred_region
    _
  $region5: #{tpu_custom_call.1} parent=0 // pred_fallthru
    _
  // Predicated region
  $region6: #{tpu_custom_call.1} parent=0 // pred_check
    _
  $region7: #{tpu_custom_call.1} parent=0 // pred_check_branch
    %19 = sbr.rel (0) target = $region9
  $region8: #{tpu_custom_call.1} parent=0 // pred_region
    _
  $region9: #{tpu_custom_call.1} parent=0 // pred_fallthru
    _
  // Predicated region
  $region10: #{tpu_custom_call.1} parent=0 // pred_check
    _
  $region11: #{tpu_custom_call.1} parent=0 // pred_check_branch
    %21 = sbr.rel (0) target = $region13
  $region12: #{tpu_custom_call.1} parent=0 // pred_region
    _
  $region13: #{tpu_custom_call.1} parent=0 // pred_fallthru
    _
  // Predicated region
  $region14: #{tpu_custom_call.1} parent=0 // pred_check
    _
  $region15: #{tpu_custom_call.1} parent=0 // pred_check_branch
    %23 = sbr.rel (0) target = $region17
  $region16: #{tpu_custom_call.1} parent=0 // pred_region
    _
  $region17: #{tpu_custom_call.1} parent=0 // pred_fallthru
    _
  // Predicated region
  $region18: #{tpu_custom_call.1} parent=0 // pred_check
    _
  $region19: #{tpu_custom_call.1} parent=0 // pred_check_branch
    %25 = sbr.rel (0) target = $region21
  $region20: #{tpu_custom_call.1} parent=0 // pred_region
    _
  $region21: #{tpu_custom_call.1} parent=0 // pred_fallthru
    _
  // Predicated region
  $region22: #{tpu_custom_call.1} parent=0 // pred_check
    _
  $region23: #{tpu_custom_call.1} parent=0 // pred_check_branch
    %27 = sbr.rel (0) target = $region25
  $region24: #{tpu_custom_call.1} parent=0 // pred_region
    _
  $region25: #{tpu_custom_call.1} parent=0 // pred_fallthru
    _
  // Predicated region
  $region26: #{tpu_custom_call.1} parent=0 // pred_check
    _
  $region27: #{tpu_custom_call.1} parent=0 // pred_check_branch
    %29 = sbr.rel (0) target = $region29
  $region28: #{tpu_custom_call.1} parent=0 // pred_region
    _
  $region29: #{tpu_custom_call.1} parent=0 // pred_fallthru
    _
  // Predicated region
  $region30: #{tpu_custom_call.1} parent=0 // pred_check
    _
  $region31: #{tpu_custom_call.1} parent=0 // pred_check_branch
    %31 = sbr.rel (0) target = $region33
  $region32: #{tpu_custom_call.1} parent=0 // pred_region
    _
  $region33: #{tpu_custom_call.1} parent=0 // pred_fallthru
    _
  // Predicated region
  $region34: #{tpu_custom_call.1} parent=0 // pred_check
    _
  $region35: #{tpu_custom_call.1} parent=0 // pred_check_branch
    %33 = sbr.rel (0) target = $region37
  $region36: #{tpu_custom_call.1} parent=0 // pred_region
    _
  $region37: #{tpu_custom_call.1} parent=0 // pred_fallthru
    _
  %v34 = vld [vmem:[%s0] sm:$0xff]
  %v35 = vld [vmem:[%s1] sm:$0xf]
  %v36 = vand.u32 2147483647, %v34
  %vm37 = vcmp.le.f32.partialorder %v36, 0.7853982
  %vm38 = vcmp.lt.s32.totalorder %v34, 0
  %v39 = vand.u32 %v34, 2139095040
  %v40 = vshrl.u32 %v39, 23
  %v41 = vsub.s32 %v40, 127
  %v42 = vand.u32 2147483647, %v34
  %v43 = vand.u32 %v42, 8388607
  %v44 = vor.u32 %v43, 8388608
  %v45 = vsub.s32 0, %v44
  %v46 = vadd.s32 %v41, 1
  %vm47 = vcmp.gt.s32.totalorder %v46, 0
  %v48 = vsel %vm47, %v46, 0
  %v49 = vshrl.u32 %v48, 5
  %v50 = vand.u32 %v48, 31
  %v51 = vsub.s32 32, %v50
  %v52 = vshrl.u32 683565275, %v51
  %v53 = vshll.u32 683565275, %v50
  %v54 = vshrl.u32 2475754826, %v51
  %v55 = vor.u32 %v53, %v54
  %v56 = vshll.u32 2475754826, %v50
  %v57 = vshrl.u32 2131351028, %v51
  %v58 = vor.u32 %v56, %v57
  %v59 = vshll.u32 2131351028, %v50
  %v60 = vshrl.u32 2102212464, %v51
  %v61 = vor.u32 %v59, %v60
  %v62 = vshll.u32 2102212464, %v50
  %v63 = vshrl.u32 920167782, %v51
  %v64 = vor.u32 %v62, %v63
  %v65 = vshll.u32 920167782, %v50
  %v66 = vshrl.u32 1326507024, %v51
  %v67 = vor.u32 %v65, %v66
  %vm68 = vcmp.lt.s32.totalorder %v49, 1
  %vm69 = vcmp.lt.s32.totalorder %v49, 2
  %vm70 = vcmp.lt.s32.totalorder %v49, 3
  %vm71 = vcmp.lt.s32.totalorder %v49, 4
  %v72 = vsel %vm68, %v52, %v55
  %v73 = vsel %vm71, %v61, 2102212464
  %v74 = vsel %vm70, %v58, %v73
  %v75 = vsel %vm69, %v72, %v74
  %v76 = vsel %vm68, %v55, %v58
  %v77 = vsel %vm71, %v64, 920167782
  %v78 = vsel %vm70, %v61, %v77
  %v79 = vsel %vm69, %v76, %v78
  %v80 = vsel %vm68, %v58, %v61
  %v81 = vsel %vm71, %v67, 1326507024
  %v82 = vsel %vm70, %v64, %v81
  %v83 = vsel %vm69, %v80, %v82
  %v84 = vshll.u32 %v44, 8
  %v85 = vmul.u32.u64.compose %v84, %v83
  %v86 = vextract.low.u32 %v85
  %v87 = vextract.high.u32 %v85
  %v88 = vmul.u32.u64.compose %v84, %v79
  %v89 = vextract.low.u32 %v88
  %v90 = vextract.high.u32 %v88
  %v91 = vmul.u32 %v84, %v75
  %v92 = vadd.s32 %v87, %v89
  %vm93 = vc.u32 %v87, %v89
  %v94 = vadd.s32 %v90, 1
  %v95 = vsel %vm93, %v94, %v90
  %v96 = vadd.s32 %v91, %v95
  %v97 = vadd.s32 %v96, 536870912
  %v98 = vshrl.u32 %v97, 30
  %v99 = vshll.u32 %v98, 30
  %v100 = vsub.s32 %v96, %v99
  %vm101 = vcmp.lt.s32.totalorder %v100, 0
  %v102 = vsub.s32 0, %v100
  %v103 = vsel %vm101, %v102, %v100
  %v104 = vclz %v103
  %v105 = vsub.s32 %v104, 2
  %vm106 = vcmp.gt.s32.totalorder 0, %v105
  %v107 = vsel %vm106, 0, %v105
  %v108 = vsub.s32 32, %v107
  %v109 = vshll.u32 %v100, %v107
  %v110 = vshrl.u32 %v92, %v108
  %v111 = vor.u32 %v109, %v110
  %v112 = vsub.s32 4294967266, %v107
  %v113 = vadd.s32 %v112, 127
  %v114 = vshll.u32 %v113, 23
  %v115 = vor.u32 4788187, %v114
  %v116 = vand.u32 2147483647, %v115
  %v118 = vcvt.s32.f32 %v111
  %v119 = vmul.f32 %v118, %v116
  %v120 = vxor.u32 %v119, 2147483648
  %v121 = vsel %vm38, %v120, %v119
  %v122 = vsub.s32 4, %v98
  %v123 = vsel %vm38, %v122, %v98
  %v124 = vsel %vm37, %v34, %v121
  %v125 = vsel %vm37, 0, %v123
  %v126 = vcosq.f32.pop %v124
  %v127 = vsinq.f32.pop %v124
  %vm128 = vweird.f32 %v34
  %v129 = vadd.s32 %v125, 3
  %v130 = vand.u32 %v129, 3
  %vm131 = vcmp.lt.s32.totalorder %v130, 2
  %vm132 = vcmp.eq.s32.totalorder %v130, 0
  %v133 = vxor.u32 %v127, 2147483648
  %v134 = vsel %vm132, %v126, %v133
  %vm135 = vcmp.eq.s32.totalorder %v130, 2
  %v136 = vxor.u32 %v126, 2147483648
  %v137 = vsel %vm135, %v136, %v127
  %v138 = vsel %vm131, %v134, %v137
  %v139 = vsel %vm128, nan, %v138
  %v140 = vld [vmem:[%s2] sm:$0xf]
  %vm141 = vcmask 31744
  %v143 = vsel %vm141, %v139, 0
  %vm145 = vcmask 1043456
  %v147 = vsel %vm145, %v140, 0
  %149 = vmatprep.subr.mxu0 0.0
  %150 = vmatpush1.msra.mxu0 %v147
  %151 = vmatprep.subr.mxu0 0.0
  %152 = vmatpush1.msra.mxu0 0.0
  %153 = vmatprep.subr.mxu0 0.0
  %154 = vmatpush1.msra.mxu0 0.0
  %155 = vmatprep.subr.mxu0 0.0
  %156 = vmatpush1.msra.mxu0 0.0
  %157 = vmatprep.subr.mxu0 0.0
  %158 = vmatpush1.msra.mxu0 0.0
  %159 = vmatprep.subr.mxu0 0.0
  %160 = vmatpush1.msra.mxu0 0.0
  %161 = vmatprep.subr.mxu0 0.0
  %162 = vmatpush1.msra.mxu0 0.0
  %163 = vmatprep.subr.mxu0 0.0
  %164 = vmatpush1.msra.mxu0 0.0
  %165 = vmatprep.subr.mxu0 0.0
  %166 = vmatpush1.msra.mxu0 0.0
  %167 = vmatprep.subr.mxu0 0.0
  %168 = vmatpush1.msra.mxu0 0.0
  %169 = vmatprep.subr.mxu0 0.0
  %170 = vmatpush1.msra.mxu0 0.0
  %171 = vmatprep.subr.mxu0 0.0
  %172 = vmatpush1.msra.mxu0 0.0
  %173 = vmatprep.subr.mxu0 0.0
  %174 = vmatpush1.msra.mxu0 0.0
  %175 = vmatprep.subr.mxu0 0.0
  %176 = vmatpush1.msra.mxu0 0.0
  %177 = vmatprep.subr.mxu0 0.0
  %178 = vmatpush1.msra.mxu0 0.0
  %179 = vmatprep.subr.mxu0 0.0
  %180 = vmatpush1.msra.mxu0 0.0
  %181 = vmatprep.subr.mxu0 0.0
  %182 = vmatpush1.msra.mxu0 0.0
  %183 = vmatprep.subr.mxu0 0.0
  %184 = vmatpush1.msra.mxu0 0.0
  %185 = vmatprep.subr.mxu0 0.0
  %186 = vmatpush1.msra.mxu0 0.0
  %187 = vmatprep.subr.mxu0 0.0
  %188 = vmatpush1.msra.mxu0 0.0
  %189 = vmatprep.subr.mxu0 0.0
  %190 = vmatpush1.msra.mxu0 0.0
  %191 = vmatprep.subr.mxu0 0.0
  %192 = vmatpush1.msra.mxu0 0.0
  %193 = vmatprep.subr.mxu0 0.0
  %194 = vmatpush1.msra.mxu0 0.0
  %195 = vmatprep.subr.mxu0 0.0
  %196 = vmatpush1.msra.mxu0 0.0
  %197 = vmatprep.subr.mxu0 0.0
  %198 = vmatpush1.msra.mxu0 0.0
  %199 = vmatprep.subr.mxu0 0.0
  %200 = vmatpush1.msra.mxu0 0.0
  %201 = vmatprep.subr.mxu0 0.0
  %202 = vmatpush1.msra.mxu0 0.0
  %203 = vmatprep.subr.mxu0 0.0
  %204 = vmatpush1.msra.mxu0 0.0
  %205 = vmatprep.subr.mxu0 0.0
  %206 = vmatpush1.msra.mxu0 0.0
  %207 = vmatprep.subr.mxu0 0.0
  %208 = vmatpush1.msra.mxu0 0.0
  %209 = vmatprep.subr.mxu0 0.0
  %210 = vmatpush1.msra.mxu0 0.0
  %211 = vmatprep.subr.mxu0 0.0
  %212 = vmatpush1.msra.mxu0 0.0
  %213 = vmatprep.mubr.f32.mxu0 0.0
  %214 = vmatmul.mubr.f32.gmra.mrb[0].mxu0 %v143
  %v215 = vpop.f32.mrb[0].mxu0
  %v216 = vadd.f32 0.0, %v215
  %v217 = vpop.f32.mrb[0].mxu0
  %218 = vdwg.mxu0
  %v220 = vsel %vm141, %v34, 0
  %v223 = vsel %vm145, %v35, 0
  %225 = vmatprep.subr.mxu0 0.0
  %226 = vmatpush1.msra.mxu0 %v223
  %227 = vmatprep.subr.mxu0 0.0
  %228 = vmatpush1.msra.mxu0 0.0
  %229 = vmatprep.subr.mxu0 0.0
  %230 = vmatpush1.msra.mxu0 0.0
  %231 = vmatprep.subr.mxu0 0.0
  %232 = vmatpush1.msra.mxu0 0.0
  %233 = vmatprep.subr.mxu0 0.0
  %234 = vmatpush1.msra.mxu0 0.0
  %235 = vmatprep.subr.mxu0 0.0
  %236 = vmatpush1.msra.mxu0 0.0
  %237 = vmatprep.subr.mxu0 0.0
  %238 = vmatpush1.msra.mxu0 0.0
  %239 = vmatprep.subr.mxu0 0.0
  %240 = vmatpush1.msra.mxu0 0.0
  %241 = vmatprep.subr.mxu0 0.0
  %242 = vmatpush1.msra.mxu0 0.0
  %243 = vmatprep.subr.mxu0 0.0
  %244 = vmatpush1.msra.mxu0 0.0
  %245 = vmatprep.subr.mxu0 0.0
  %246 = vmatpush1.msra.mxu0 0.0
  %247 = vmatprep.subr.mxu0 0.0
  %248 = vmatpush1.msra.mxu0 0.0
  %249 = vmatprep.subr.mxu0 0.0
  %250 = vmatpush1.msra.mxu0 0.0
  %251 = vmatprep.subr.mxu0 0.0
  %252 = vmatpush1.msra.mxu0 0.0
  %253 = vmatprep.subr.mxu0 0.0
  %254 = vmatpush1.msra.mxu0 0.0
  %255 = vmatprep.subr.mxu0 0.0
  %256 = vmatpush1.msra.mxu0 0.0
  %257 = vmatprep.subr.mxu0 0.0
  %258 = vmatpush1.msra.mxu0 0.0
  %259 = vmatprep.subr.mxu0 0.0
  %260 = vmatpush1.msra.mxu0 0.0
  %261 = vmatprep.subr.mxu0 0.0
  %262 = vmatpush1.msra.mxu0 0.0
  %263 = vmatprep.subr.mxu0 0.0
  %264 = vmatpush1.msra.mxu0 0.0
  %265 = vmatprep.subr.mxu0 0.0
  %266 = vmatpush1.msra.mxu0 0.0
  %267 = vmatprep.subr.mxu0 0.0
  %268 = vmatpush1.msra.mxu0 0.0
  %269 = vmatprep.subr.mxu0 0.0
  %270 = vmatpush1.msra.mxu0 0.0
  %271 = vmatprep.subr.mxu0 0.0
  %272 = vmatpush1.msra.mxu0 0.0
  %273 = vmatprep.subr.mxu0 0.0
  %274 = vmatpush1.msra.mxu0 0.0
  %275 = vmatprep.subr.mxu0 0.0
  %276 = vmatpush1.msra.mxu0 0.0
  %277 = vmatprep.subr.mxu0 0.0
  %278 = vmatpush1.msra.mxu0 0.0
  %279 = vmatprep.subr.mxu0 0.0
  %280 = vmatpush1.msra.mxu0 0.0
  %281 = vmatprep.subr.mxu0 0.0
  %282 = vmatpush1.msra.mxu0 0.0
  %283 = vmatprep.subr.mxu0 0.0
  %284 = vmatpush1.msra.mxu0 0.0
  %285 = vmatprep.subr.mxu0 0.0
  %286 = vmatpush1.msra.mxu0 0.0
  %287 = vmatprep.subr.mxu0 0.0
  %288 = vmatpush1.msra.mxu0 0.0
  %289 = vmatprep.mubr.f32.mxu0 0.0
  %290 = vmatmul.mubr.f32.gmra.mrb[0].mxu0 %v220
  %v291 = vpop.f32.mrb[0].mxu0
  %v292 = vadd.f32 %v216, %v291
  %v293 = vpop.f32.mrb[0].mxu0
  %294 = vdwg.mxu0
  %v295 = vand.u32 2147483647, %v34
  %vm296 = vcmp.le.f32.partialorder %v295, 0.7853982
  %vm297 = vcmp.lt.s32.totalorder %v34, 0
  %v298 = vand.u32 %v34, 2139095040
  %v299 = vshrl.u32 %v298, 23
  %v300 = vsub.s32 %v299, 127
  %v301 = vand.u32 2147483647, %v34
  %v302 = vand.u32 %v301, 8388607
  %v303 = vor.u32 %v302, 8388608
  %v304 = vsub.s32 0, %v303
  %v305 = vadd.s32 %v300, 1
  %vm306 = vcmp.gt.s32.totalorder %v305, 0
  %v307 = vsel %vm306, %v305, 0
  %v308 = vshrl.u32 %v307, 5
  %v309 = vand.u32 %v307, 31
  %v310 = vsub.s32 32, %v309
  %v311 = vshrl.u32 683565275, %v310
  %v312 = vshll.u32 683565275, %v309
  %v313 = vshrl.u32 2475754826, %v310
  %v314 = vor.u32 %v312, %v313
  %v315 = vshll.u32 2475754826, %v309
  %v316 = vshrl.u32 2131351028, %v310
  %v317 = vor.u32 %v315, %v316
  %v318 = vshll.u32 2131351028, %v309
  %v319 = vshrl.u32 2102212464, %v310
  %v320 = vor.u32 %v318, %v319
  %v321 = vshll.u32 2102212464, %v309
  %v322 = vshrl.u32 920167782, %v310
  %v323 = vor.u32 %v321, %v322
  %v324 = vshll.u32 920167782, %v309
  %v325 = vshrl.u32 1326507024, %v310
  %v326 = vor.u32 %v324, %v325
  %vm327 = vcmp.lt.s32.totalorder %v308, 1
  %vm328 = vcmp.lt.s32.totalorder %v308, 2
  %vm329 = vcmp.lt.s32.totalorder %v308, 3
  %vm330 = vcmp.lt.s32.totalorder %v308, 4
  %v331 = vsel %vm327, %v311, %v314
  %v332 = vsel %vm330, %v320, 2102212464
  %v333 = vsel %vm329, %v317, %v332
  %v334 = vsel %vm328, %v331, %v333
  %v335 = vsel %vm327, %v314, %v317
  %v336 = vsel %vm330, %v323, 920167782
  %v337 = vsel %vm329, %v320, %v336
  %v338 = vsel %vm328, %v335, %v337
  %v339 = vsel %vm327, %v317, %v320
  %v340 = vsel %vm330, %v326, 1326507024
  %v341 = vsel %vm329, %v323, %v340
  %v342 = vsel %vm328, %v339, %v341
  %v343 = vshll.u32 %v303, 8
  %v344 = vmul.u32.u64.compose %v343, %v342
  %v345 = vextract.low.u32 %v344
  %v346 = vextract.high.u32 %v344
  %v347 = vmul.u32.u64.compose %v343, %v338
  %v348 = vextract.low.u32 %v347
  %v349 = vextract.high.u32 %v347
  %v350 = vmul.u32 %v343, %v334
  %v351 = vadd.s32 %v346, %v348
  %vm352 = vc.u32 %v346, %v348
  %v353 = vadd.s32 %v349, 1
  %v354 = vsel %vm352, %v353, %v349
  %v355 = vadd.s32 %v350, %v354
  %v356 = vadd.s32 %v355, 536870912
  %v357 = vshrl.u32 %v356, 30
  %v358 = vshll.u32 %v357, 30
  %v359 = vsub.s32 %v355, %v358
  %vm360 = vcmp.lt.s32.totalorder %v359, 0
  %v361 = vsub.s32 0, %v359
  %v362 = vsel %vm360, %v361, %v359
  %v363 = vclz %v362
  %v364 = vsub.s32 %v363, 2
  %vm365 = vcmp.gt.s32.totalorder 0, %v364
  %v366 = vsel %vm365, 0, %v364
  %v367 = vsub.s32 32, %v366
  %v368 = vshll.u32 %v359, %v366
  %v369 = vshrl.u32 %v351, %v367
  %v370 = vor.u32 %v368, %v369
  %v371 = vsub.s32 4294967266, %v366
  %v372 = vadd.s32 %v371, 127
  %v373 = vshll.u32 %v372, 23
  %v374 = vor.u32 4788187, %v373
  %v375 = vand.u32 2147483647, %v374
  %v377 = vcvt.s32.f32 %v370
  %v378 = vmul.f32 %v377, %v375
  %v379 = vxor.u32 %v378, 2147483648
  %v380 = vsel %vm297, %v379, %v378
  %v381 = vsub.s32 4, %v357
  %v382 = vsel %vm297, %v381, %v357
  %v383 = vsel %vm296, %v34, %v380
  %v384 = vsel %vm296, 0, %v382
  %v385 = vcosq.f32.pop %v383
  %v386 = vsinq.f32.pop %v383
  %vm387 = vweird.f32 %v34
  %v388 = vand.u32 %v384, 3
  %vm389 = vcmp.lt.s32.totalorder %v388, 2
  %vm390 = vcmp.eq.s32.totalorder %v388, 0
  %v391 = vxor.u32 %v386, 2147483648
  %v392 = vsel %vm390, %v385, %v391
  %vm393 = vcmp.eq.s32.totalorder %v388, 2
  %v394 = vxor.u32 %v385, 2147483648
  %v395 = vsel %vm393, %v394, %v386
  %v396 = vsel %vm389, %v392, %v395
  %v397 = vsel %vm387, nan, %v396
  %v398 = vld [vmem:[%s3] sm:$0xf]
  %v400 = vsel %vm141, %v397, 0
  %v403 = vsel %vm145, %v398, 0
  %405 = vmatprep.subr.mxu0 0.0
  %406 = vmatpush1.msra.mxu0 %v403
  %407 = vmatprep.subr.mxu0 0.0
  %408 = vmatpush1.msra.mxu0 0.0
  %409 = vmatprep.subr.mxu0 0.0
  %410 = vmatpush1.msra.mxu0 0.0
  %411 = vmatprep.subr.mxu0 0.0
  %412 = vmatpush1.msra.mxu0 0.0
  %413 = vmatprep.subr.mxu0 0.0
  %414 = vmatpush1.msra.mxu0 0.0
  %415 = vmatprep.subr.mxu0 0.0
  %416 = vmatpush1.msra.mxu0 0.0
  %417 = vmatprep.subr.mxu0 0.0
  %418 = vmatpush1.msra.mxu0 0.0
  %419 = vmatprep.subr.mxu0 0.0
  %420 = vmatpush1.msra.mxu0 0.0
  %421 = vmatprep.subr.mxu0 0.0
  %422 = vmatpush1.msra.mxu0 0.0
  %423 = vmatprep.subr.mxu0 0.0
  %424 = vmatpush1.msra.mxu0 0.0
  %425 = vmatprep.subr.mxu0 0.0
  %426 = vmatpush1.msra.mxu0 0.0
  %427 = vmatprep.subr.mxu0 0.0
  %428 = vmatpush1.msra.mxu0 0.0
  %429 = vmatprep.subr.mxu0 0.0
  %430 = vmatpush1.msra.mxu0 0.0
  %431 = vmatprep.subr.mxu0 0.0
  %432 = vmatpush1.msra.mxu0 0.0
  %433 = vmatprep.subr.mxu0 0.0
  %434 = vmatpush1.msra.mxu0 0.0
  %435 = vmatprep.subr.mxu0 0.0
  %436 = vmatpush1.msra.mxu0 0.0
  %437 = vmatprep.subr.mxu0 0.0
  %438 = vmatpush1.msra.mxu0 0.0
  %439 = vmatprep.subr.mxu0 0.0
  %440 = vmatpush1.msra.mxu0 0.0
  %441 = vmatprep.subr.mxu0 0.0
  %442 = vmatpush1.msra.mxu0 0.0
  %443 = vmatprep.subr.mxu0 0.0
  %444 = vmatpush1.msra.mxu0 0.0
  %445 = vmatprep.subr.mxu0 0.0
  %446 = vmatpush1.msra.mxu0 0.0
  %447 = vmatprep.subr.mxu0 0.0
  %448 = vmatpush1.msra.mxu0 0.0
  %449 = vmatprep.subr.mxu0 0.0
  %450 = vmatpush1.msra.mxu0 0.0
  %451 = vmatprep.subr.mxu0 0.0
  %452 = vmatpush1.msra.mxu0 0.0
  %453 = vmatprep.subr.mxu0 0.0
  %454 = vmatpush1.msra.mxu0 0.0
  %455 = vmatprep.subr.mxu0 0.0
  %456 = vmatpush1.msra.mxu0 0.0
  %457 = vmatprep.subr.mxu0 0.0
  %458 = vmatpush1.msra.mxu0 0.0
  %459 = vmatprep.subr.mxu0 0.0
  %460 = vmatpush1.msra.mxu0 0.0
  %461 = vmatprep.subr.mxu0 0.0
  %462 = vmatpush1.msra.mxu0 0.0
  %463 = vmatprep.subr.mxu0 0.0
  %464 = vmatpush1.msra.mxu0 0.0
  %465 = vmatprep.subr.mxu0 0.0
  %466 = vmatpush1.msra.mxu0 0.0
  %467 = vmatprep.subr.mxu0 0.0
  %468 = vmatpush1.msra.mxu0 0.0
  %469 = vmatprep.mubr.f32.mxu0 0.0
  %470 = vmatmul.mubr.f32.gmra.mrb[0].mxu0 %v400
  %v471 = vpop.f32.mrb[0].mxu0
  %v472 = vadd.f32 0.0, %v471
  %v473 = vpop.f32.mrb[0].mxu0
  %474 = vdwg.mxu0
  %v475 = vadd.f32 %v292, %v472
  %v476 = vld [vmem:[%s4] sm:$0x1]
  %v478 = vlaneseq
  %v479 = vshrl.u32 %v478, 7
  %v480 = vsub.s32 0, %v479
  %v481 = vrot.slane %v476, %v480
  %v483 = vadd.f32 %v475, %v481
  %v484 = vmax.f32 %v483, 0.0
  %v485 = vld [vmem:[%s5] sm:$0xff]
  %v486 = vld [vmem:[%s5 + $0x8] sm:$0xff]
  %v487 = vld [vmem:[%s5 + $0x10] sm:$0xff]
  %v488 = vld [vmem:[%s5 + $0x18] sm:$0xff]
  %v489 = vld [vmem:[%s6] sm:$0x1]
  %v491 = vlaneseq
  %v492 = vshrl.u32 %v491, 7
  %v493 = vsub.s32 0, %v492
  %v494 = vrot.slane %v489, %v493
  %vm496 = vcmask 261120
  %v498 = vsel %vm496, %v484, 0
  %500 = vmatprep.subr.mxu0 0.0
  %501 = vmatpush1.msra.mxu0 %v485
  %502 = vmatprep.subr.mxu0 0.0
  %503 = vmatpush1.msra.mxu0 %v486
  %504 = vmatprep.subr.mxu0 0.0
  %505 = vmatpush1.msra.mxu0 %v487
  %506 = vmatprep.subr.mxu0 0.0
  %507 = vmatpush1.msra.mxu0 %v488
  %508 = vmatprep.subr.mxu0 0.0
  %509 = vmatpush1.msra.mxu0 0.0
  %510 = vmatprep.subr.mxu0 0.0
  %511 = vmatpush1.msra.mxu0 0.0
  %512 = vmatprep.subr.mxu0 0.0
  %513 = vmatpush1.msra.mxu0 0.0
  %514 = vmatprep.subr.mxu0 0.0
  %515 = vmatpush1.msra.mxu0 0.0
  %516 = vmatprep.subr.mxu0 0.0
  %517 = vmatpush1.msra.mxu0 0.0
  %518 = vmatprep.subr.mxu0 0.0
  %519 = vmatpush1.msra.mxu0 0.0
  %520 = vmatprep.subr.mxu0 0.0
  %521 = vmatpush1.msra.mxu0 0.0
  %522 = vmatprep.subr.mxu0 0.0
  %523 = vmatpush1.msra.mxu0 0.0
  %524 = vmatprep.subr.mxu0 0.0
  %525 = vmatpush1.msra.mxu0 0.0
  %526 = vmatprep.subr.mxu0 0.0
  %527 = vmatpush1.msra.mxu0 0.0
  %528 = vmatprep.subr.mxu0 0.0
  %529 = vmatpush1.msra.mxu0 0.0
  %530 = vmatprep.subr.mxu0 0.0
  %531 = vmatpush1.msra.mxu0 0.0
  %532 = vmatprep.subr.mxu0 0.0
  %533 = vmatpush1.msra.mxu0 0.0
  %534 = vmatprep.subr.mxu0 0.0
  %535 = vmatpush1.msra.mxu0 0.0
  %536 = vmatprep.subr.mxu0 0.0
  %537 = vmatpush1.msra.mxu0 0.0
  %538 = vmatprep.subr.mxu0 0.0
  %539 = vmatpush1.msra.mxu0 0.0
  %540 = vmatprep.subr.mxu0 0.0
  %541 = vmatpush1.msra.mxu0 0.0
  %542 = vmatprep.subr.mxu0 0.0
  %543 = vmatpush1.msra.mxu0 0.0
  %544 = vmatprep.subr.mxu0 0.0
  %545 = vmatpush1.msra.mxu0 0.0
  %546 = vmatprep.subr.mxu0 0.0
  %547 = vmatpush1.msra.mxu0 0.0
  %548 = vmatprep.subr.mxu0 0.0
  %549 = vmatpush1.msra.mxu0 0.0
  %550 = vmatprep.subr.mxu0 0.0
  %551 = vmatpush1.msra.mxu0 0.0
  %552 = vmatprep.subr.mxu0 0.0
  %553 = vmatpush1.msra.mxu0 0.0
  %554 = vmatprep.subr.mxu0 0.0
  %555 = vmatpush1.msra.mxu0 0.0
  %556 = vmatprep.subr.mxu0 0.0
  %557 = vmatpush1.msra.mxu0 0.0
  %558 = vmatprep.subr.mxu0 0.0
  %559 = vmatpush1.msra.mxu0 0.0
  %560 = vmatprep.subr.mxu0 0.0
  %561 = vmatpush1.msra.mxu0 0.0
  %562 = vmatprep.subr.mxu0 0.0
  %563 = vmatpush1.msra.mxu0 0.0
  %564 = vmatprep.mubr.f32.mxu0 0.0
  %565 = vmatmul.mubr.f32.gmra.mrb[0].mxu0 %v498
  %v566 = vpop.f32.mrb[0].mxu0
  %v567 = vadd.f32 %v494, %v566
  %v568 = vpop.f32.mrb[0].mxu0
  %569 = vdwg.mxu0
  %v570 = vmax.f32 %v567, 0.0
  %v571 = vld [vmem:[%s7] sm:$0xff]
  %v572 = vld [vmem:[%s7 + $0x8] sm:$0xff]
  %v573 = vld [vmem:[%s7 + $0x10] sm:$0xff]
  %v574 = vld [vmem:[%s7 + $0x18] sm:$0xff]
  %v575 = vld [vmem:[#allocation2] sm:$0x1]
  %v577 = vlaneseq
  %v578 = vshrl.u32 %v577, 7
  %v579 = vsub.s32 0, %v578
  %v580 = vrot.slane %v575, %v579
  %v583 = vsel %vm496, %v570, 0
  %585 = vmatprep.subr.mxu0 0.0
  %586 = vmatpush1.msra.mxu0 %v571
  %587 = vmatprep.subr.mxu0 0.0
  %588 = vmatpush1.msra.mxu0 %v572
  %589 = vmatprep.subr.mxu0 0.0
  %590 = vmatpush1.msra.mxu0 %v573
  %591 = vmatprep.subr.mxu0 0.0
  %592 = vmatpush1.msra.mxu0 %v574
  %593 = vmatprep.subr.mxu0 0.0
  %594 = vmatpush1.msra.mxu0 0.0
  %595 = vmatprep.subr.mxu0 0.0
  %596 = vmatpush1.msra.mxu0 0.0
  %597 = vmatprep.subr.mxu0 0.0
  %598 = vmatpush1.msra.mxu0 0.0
  %599 = vmatprep.subr.mxu0 0.0
  %600 = vmatpush1.msra.mxu0 0.0
  %601 = vmatprep.subr.mxu0 0.0
  %602 = vmatpush1.msra.mxu0 0.0
  %603 = vmatprep.subr.mxu0 0.0
  %604 = vmatpush1.msra.mxu0 0.0
  %605 = vmatprep.subr.mxu0 0.0
  %606 = vmatpush1.msra.mxu0 0.0
  %607 = vmatprep.subr.mxu0 0.0
  %608 = vmatpush1.msra.mxu0 0.0
  %609 = vmatprep.subr.mxu0 0.0
  %610 = vmatpush1.msra.mxu0 0.0
  %611 = vmatprep.subr.mxu0 0.0
  %612 = vmatpush1.msra.mxu0 0.0
  %613 = vmatprep.subr.mxu0 0.0
  %614 = vmatpush1.msra.mxu0 0.0
  %615 = vmatprep.subr.mxu0 0.0
  %616 = vmatpush1.msra.mxu0 0.0
  %617 = vmatprep.subr.mxu0 0.0
  %618 = vmatpush1.msra.mxu0 0.0
  %619 = vmatprep.subr.mxu0 0.0
  %620 = vmatpush1.msra.mxu0 0.0
  %621 = vmatprep.subr.mxu0 0.0
  %622 = vmatpush1.msra.mxu0 0.0
  %623 = vmatprep.subr.mxu0 0.0
  %624 = vmatpush1.msra.mxu0 0.0
  %625 = vmatprep.subr.mxu0 0.0
  %626 = vmatpush1.msra.mxu0 0.0
  %627 = vmatprep.subr.mxu0 0.0
  %628 = vmatpush1.msra.mxu0 0.0
  %629 = vmatprep.subr.mxu0 0.0
  %630 = vmatpush1.msra.mxu0 0.0
  %631 = vmatprep.subr.mxu0 0.0
  %632 = vmatpush1.msra.mxu0 0.0
  %633 = vmatprep.subr.mxu0 0.0
  %634 = vmatpush1.msra.mxu0 0.0
  %635 = vmatprep.subr.mxu0 0.0
  %636 = vmatpush1.msra.mxu0 0.0
  %637 = vmatprep.subr.mxu0 0.0
  %638 = vmatpush1.msra.mxu0 0.0
  %639 = vmatprep.subr.mxu0 0.0
  %640 = vmatpush1.msra.mxu0 0.0
  %641 = vmatprep.subr.mxu0 0.0
  %642 = vmatpush1.msra.mxu0 0.0
  %643 = vmatprep.subr.mxu0 0.0
  %644 = vmatpush1.msra.mxu0 0.0
  %645 = vmatprep.subr.mxu0 0.0
  %646 = vmatpush1.msra.mxu0 0.0
  %647 = vmatprep.subr.mxu0 0.0
  %648 = vmatpush1.msra.mxu0 0.0
  %649 = vmatprep.mubr.f32.mxu0 0.0
  %650 = vmatmul.mubr.f32.gmra.mrb[0].mxu0 %v583
  %v651 = vpop.f32.mrb[0].mxu0
  %v652 = vadd.f32 %v580, %v651
  %v653 = vpop.f32.mrb[0].mxu0
  %654 = vdwg.mxu0
  %vm655 = vcmask 7168
  %656 = vst.msk [vmem:[%s9] sm:$0xff] %vm655, %v652
  // Predicated region
  $region38: #{tpu_custom_call.1} parent=0 // pred_check
    _
  $region39: #{tpu_custom_call.1} parent=0 // pred_check_branch
    %658 = sbr.rel (0) target = $region41
  $region40: #{tpu_custom_call.1} parent=0 // pred_region
    _
  $region41: #{tpu_custom_call.1} parent=0 // pred_fallthru
    _
  // Predicated region
  $region42: #{tpu_custom_call.1} parent=0 // pred_check
    _
  $region43: #{tpu_custom_call.1} parent=0 // pred_check_branch
    %660 = sbr.rel (0) target = $region45
  $region44: #{tpu_custom_call.1} parent=0 // pred_region
    _
  $region45: #{tpu_custom_call.1} parent=0 // pred_fallthru
    _

</llo_original>
